<compile_context>
chip_gen: v7x
topology: tpu7x:2x2x1
jax: 0.10.0
libtpu: 0.0.40
codegen_flags: <defaults>
</compile_context>

<pallas_src>
import math

import jax
import jax.numpy as jnp
from jax.experimental import pallas as pl
from jax.experimental.pallas import tpu as pltpu

_LANE = 128
_NEG_INF = -1e30          # padded fc-bias value -> exp(...) == 0 under softmax


def _round_up(n, m):
    return ((n + m - 1) // m) * m


def _sigmoid(x):
    # EUP-friendly, numerically clean sigmoid: 0.5 * (tanh(x/2) + 1).
    return 0.5 * (jnp.tanh(0.5 * x) + 1.0)


def _lstm_model_kernel(x_ref, wih0_ref, b0_ref, wihr_ref, br_ref,
                       fcw_ref, fcb_ref, out_ref):
    # x_ref:    (Bp, D)            the single timestep (S == 1), batch padded to 8k
    # wih0_ref: (D, 4*HP)   b0_ref: (1, 4*HP)         layer 0, gate-column padded
    # wihr_ref: (3, HP, 4*HP) br_ref: (3, 1, 4*HP)    layers 1..3
    # fcw_ref:  (HP, 128)   fcb_ref: (1, 128)         fc, lane-dense padded
    # out_ref:  (Bp, 128)                             softmax probs (cols 0..2 real)
    HP = wihr_ref.shape[1]          # per-gate padded width (== 128)

    def cell_from_zero_state(x_t, wih, b):
        # One LSTM step with h_prev = c_prev = 0:
        #   z = x @ W_ih + b            (h @ W_hh == 0 -> W_hh never needed)
        #   c = sigma(z_i) * tanh(z_g)  (f * c_prev == 0 -> forget gate skipped)
        #   h = sigma(z_o) * tanh(c)
        # Gate k occupies lanes [k*HP, k*HP+H); padded lanes have zero weights and
        # bias, so g_pad = tanh(0) = 0 and h_pad stays exactly 0.
        z = jnp.dot(x_t, wih, preferred_element_type=jnp.float32) + b   # (Bp, 4*HP)
        i = _sigmoid(z[:, 0 * HP:1 * HP])
        g = jnp.tanh(z[:, 2 * HP:3 * HP])
        o = _sigmoid(z[:, 3 * HP:4 * HP])
        c = i * g
        return o * jnp.tanh(c)                                          # (Bp, HP)

    # TODO(synk): nn.LSTM(dropout=0.4) applies dropout between layers only in
    # training mode; this kernel implements eval/inference semantics (no-op).
    h = cell_from_zero_state(x_ref[...], wih0_ref[...], b0_ref[...])
    for l in range(wihr_ref.shape[0]):          # statically unrolled (3 layers)
        h = cell_from_zero_state(h, wihr_ref[l], br_ref[l])

    # Flatten((B, 1, H)) -> (B, H); fc = Linear(H, 3); Softmax(dim=1).
    # Padded fc-weight rows/cols are zero and padded bias cols are -1e30, so the
    # 128-lane softmax is exact for the first 3 lanes and 0 elsewhere.
    logits = (jnp.dot(h, fcw_ref[...], preferred_element_type=jnp.float32)
              + fcb_ref[...])                                           # (Bp, 128)
    m = jnp.max(logits, axis=1, keepdims=True)
    e = jnp.exp(logits - m)
    out_ref[...] = e / jnp.sum(e, axis=1, keepdims=True)


def init_params(key, input_dim, hidden_size, num_layers=4):
    """PyTorch-style U(-1/sqrt(H), 1/sqrt(H)) init, x @ W layout, gate order (i,f,g,o)."""
    H = hidden_size
    k = 1.0 / math.sqrt(H)
    n_rest = num_layers - 1
    ks = jax.random.split(key, 8)

    def u(kk, shape):
        return jax.random.uniform(kk, shape, jnp.float32, -k, k)

    return dict(
        w_ih0=u(ks[0], (input_dim, 4 * H)),
        w_hh0=u(ks[1], (H, 4 * H)),              # multiplied by h0 == 0; kept for the reference
        b0=u(ks[2], (1, 4 * H)),                 # combined b_ih + b_hh
        w_ih_rest=u(ks[3], (n_rest, H, 4 * H)),
        w_hh_rest=u(ks[4], (n_rest, H, 4 * H)),  # multiplied by h0 == 0; kept for the reference
        b_rest=u(ks[5], (n_rest, 1, 4 * H)),
        fc_w=u(ks[6], (H, 3)),
        fc_b=u(ks[7], (1, 3)),
    )


def pack_params(params):
    """One-time repack into the lane-aligned layout the kernel expects.

    Each gate's H columns land at a 128-lane-aligned offset (k*HP) and are zero
    padded to HP=128 lanes; layer-1..3 input rows are zero padded H -> HP; fc is
    padded to a lane-dense (HP, 128)/(1, 128) block with -1e30 in padded bias
    columns so the in-kernel softmax ignores them.  W_hh is dropped entirely
    (h0 == 0 for the single supported timestep).
    """
    H = params["w_hh0"].shape[0]
    HP = _round_up(H, _LANE)

    def pad_gate_cols(w):                       # (..., in, 4H) -> (..., in, 4*HP)
        parts = []
        for g in range(4):
            p = w[..., g * H:(g + 1) * H]
            pad = [(0, 0)] * (w.ndim - 1) + [(0, HP - H)]
            parts.append(jnp.pad(p, pad))
        return jnp.concatenate(parts, axis=-1)

    w_ih0 = pad_gate_cols(params["w_ih0"]).astype(jnp.float32)           # (D, 4*HP)
    b0 = pad_gate_cols(params["b0"]).astype(jnp.float32)                 # (1, 4*HP)
    w_ih_rest = pad_gate_cols(params["w_ih_rest"])                       # (3, H, 4*HP)
    w_ih_rest = jnp.pad(w_ih_rest, ((0, 0), (0, HP - H), (0, 0))).astype(jnp.float32)
    b_rest = pad_gate_cols(params["b_rest"]).astype(jnp.float32)         # (3, 1, 4*HP)

    fc_w = jnp.pad(params["fc_w"], ((0, HP - H), (0, _LANE - 3))).astype(jnp.float32)
    fc_b = jnp.pad(params["fc_b"], ((0, 0), (0, _LANE - 3)),
                   constant_values=_NEG_INF).astype(jnp.float32)         # (1, 128)

    return dict(w_ih0=w_ih0, b0=b0, w_ih_rest=w_ih_rest, b_rest=b_rest,
                fc_w=fc_w, fc_b=fc_b)


@jax.jit
def lstm_model_forward(x, packed):
    """x: (B, S, D) batch_first like the PyTorch module (S must be 1). Returns (B, 3)."""
    B, S, D = x.shape
    if S != 1:  # Flatten -> Linear(H, 3) only shape-checks when S == 1
        raise ValueError("LSTMModel.forward requires seq_len == 1 (Flatten + Linear(H,3)).")
    Bp = _round_up(B, 8)                        # fill f32 sublanes
    x2 = jnp.pad(x[:, 0, :].astype(jnp.float32), ((0, Bp - B), (0, 0)))  # (Bp, D)

    out = pl.pallas_call(
        _lstm_model_kernel,
        out_shape=jax.ShapeDtypeStruct((Bp, _LANE), jnp.float32),
        in_specs=[pl.BlockSpec(memory_space=pltpu.MemorySpace.VMEM)] * 7,
        out_specs=pl.BlockSpec(memory_space=pltpu.MemorySpace.VMEM),
    )(x2, packed["w_ih0"], packed["b0"],
      packed["w_ih_rest"], packed["b_rest"],
      packed["fc_w"], packed["fc_b"])
    return out[:B, :3]


def reference_forward(x, params):
    """Pure-JAX reference with the FULL LSTM cell math (incl. W_hh, forget gate)."""
    B, S, _ = x.shape
    H = params["w_hh0"].shape[0]

    def run_layer(inp, wih, whh, b):
        h = jnp.zeros((B, H), jnp.float32)
        c = jnp.zeros((B, H), jnp.float32)
        outs = []
        for t in range(S):
            z = inp[:, t, :] @ wih + h @ whh + b
            i = jax.nn.sigmoid(z[:, :H])
            f = jax.nn.sigmoid(z[:, H:2 * H])
            g = jnp.tanh(z[:, 2 * H:3 * H])
            o = jax.nn.sigmoid(z[:, 3 * H:])
            c = f * c + i * g
            h = o * jnp.tanh(c)
            outs.append(h)
        return jnp.stack(outs, axis=1)

    y = run_layer(x.astype(jnp.float32), params["w_ih0"], params["w_hh0"], params["b0"])
    for l in range(params["w_ih_rest"].shape[0]):
        y = run_layer(y, params["w_ih_rest"][l], params["w_hh_rest"][l],
                      params["b_rest"][l])
    flat = y.reshape(B, S * H)
    logits = flat @ params["fc_w"] + params["fc_b"]
    return jax.nn.softmax(logits, axis=1)


if __name__ == "__main__":
    key = jax.random.PRNGKey(0)
    kx, kp = jax.random.split(key)

    # seq_len must be 1: Flatten gives (B, S*H) and fc = Linear(H, 3).
    B, S, D, H = 2, 1, 16, 32
    x = jax.random.normal(kx, (B, S, D), dtype=jnp.float32)
    params = init_params(kp, input_dim=D, hidden_size=H, num_layers=4)
    packed = pack_params(params)        # one-time lane-aligned repack (outside jit)

    out = lstm_model_forward(x, packed)
    out = jax.block_until_ready(out)

    ref = reference_forward(x, params)
    assert out.shape == (B, 3), out.shape
    assert bool(jnp.allclose(out, ref, atol=1e-4, rtol=1e-4)), (out, ref)
    assert bool(jnp.allclose(jnp.sum(out, axis=1), 1.0, atol=1e-5))
    print("KERNEL_OK")
</pallas_src>

<mosaic_0001>
module attributes {stable_mosaic.version = 11 : i64} {
  func.func @_lstm_model_kernel(%arg0: memref<8x16xf32, #tpu.memory_space<vmem>>, %arg1: memref<16x512xf32, #tpu.memory_space<vmem>>, %arg2: memref<1x512xf32, #tpu.memory_space<vmem>>, %arg3: memref<3x128x512xf32, #tpu.memory_space<vmem>>, %arg4: memref<3x1x512xf32, #tpu.memory_space<vmem>>, %arg5: memref<128x128xf32, #tpu.memory_space<vmem>>, %arg6: memref<1x128xf32, #tpu.memory_space<vmem>>, %arg7: memref<8x128xf32, #tpu.memory_space<vmem>>) attributes {dimension_semantics = [], scalar_prefetch = 0 : i64, scratch_operands = 0 : i64, tpu.core_type = #tpu.core_type<tc>} {
    %c0 = arith.constant 0 : index
    %c0_0 = arith.constant 0 : index
    %0 = vector.load %arg0[%c0, %c0_0] : memref<8x16xf32, #tpu.memory_space<vmem>>, vector<8x16xf32>
    %c0_1 = arith.constant 0 : index
    %c0_2 = arith.constant 0 : index
    %1 = vector.load %arg1[%c0_1, %c0_2] : memref<16x512xf32, #tpu.memory_space<vmem>>, vector<16x512xf32>
    %c0_3 = arith.constant 0 : index
    %c0_4 = arith.constant 0 : index
    %2 = vector.load %arg2[%c0_3, %c0_4] : memref<1x512xf32, #tpu.memory_space<vmem>>, vector<1x512xf32>
    %cst = arith.constant dense<0.000000e+00> : vector<8x512xf32>
    %3 = tpu.matmul %0, %1, %cst {dimension_numbers = #tpu.dot_dimension_numbers<[1], [0], [0], [1], [0, 0, 1, 1], [], []>} : vector<8x16xf32>, vector<16x512xf32>, vector<8x512xf32> -> vector<8x512xf32>
    %4 = vector.broadcast %2 : vector<1x512xf32> to vector<8x512xf32>
    %5 = arith.addf %3, %4 : vector<8x512xf32>
    %6 = vector.extract_strided_slice %5 {offsets = [0, 0], sizes = [8, 128], strides = [1, 1]} : vector<8x512xf32> to vector<8x128xf32>
    %cst_5 = arith.constant 5.000000e-01 : f32
    %7 = vector.broadcast %cst_5 : f32 to vector<8x128xf32>
    %8 = arith.mulf %7, %6 : vector<8x128xf32>
    %9 = math.tanh %8 : vector<8x128xf32>
    %cst_6 = arith.constant 1.000000e+00 : f32
    %10 = vector.broadcast %cst_6 : f32 to vector<8x128xf32>
    %11 = arith.addf %9, %10 : vector<8x128xf32>
    %cst_7 = arith.constant 5.000000e-01 : f32
    %12 = vector.broadcast %cst_7 : f32 to vector<8x128xf32>
    %13 = arith.mulf %12, %11 : vector<8x128xf32>
    %14 = vector.extract_strided_slice %5 {offsets = [0, 256], sizes = [8, 128], strides = [1, 1]} : vector<8x512xf32> to vector<8x128xf32>
    %15 = math.tanh %14 : vector<8x128xf32>
    %16 = vector.extract_strided_slice %5 {offsets = [0, 384], sizes = [8, 128], strides = [1, 1]} : vector<8x512xf32> to vector<8x128xf32>
    %cst_8 = arith.constant 5.000000e-01 : f32
    %17 = vector.broadcast %cst_8 : f32 to vector<8x128xf32>
    %18 = arith.mulf %17, %16 : vector<8x128xf32>
    %19 = math.tanh %18 : vector<8x128xf32>
    %cst_9 = arith.constant 1.000000e+00 : f32
    %20 = vector.broadcast %cst_9 : f32 to vector<8x128xf32>
    %21 = arith.addf %19, %20 : vector<8x128xf32>
    %cst_10 = arith.constant 5.000000e-01 : f32
    %22 = vector.broadcast %cst_10 : f32 to vector<8x128xf32>
    %23 = arith.mulf %22, %21 : vector<8x128xf32>
    %24 = arith.mulf %13, %15 : vector<8x128xf32>
    %25 = math.tanh %24 : vector<8x128xf32>
    %26 = arith.mulf %23, %25 : vector<8x128xf32>
    %c0_11 = arith.constant 0 : index
    %c0_12 = arith.constant 0 : index
    %c0_13 = arith.constant 0 : index
    %27 = vector.load %arg3[%c0_11, %c0_12, %c0_13] : memref<3x128x512xf32, #tpu.memory_space<vmem>>, vector<1x128x512xf32>
    %28 = vector.shape_cast %27 : vector<1x128x512xf32> to vector<128x512xf32>
    %c0_14 = arith.constant 0 : index
    %c0_15 = arith.constant 0 : index
    %c0_16 = arith.constant 0 : index
    %29 = vector.load %arg4[%c0_14, %c0_15, %c0_16] : memref<3x1x512xf32, #tpu.memory_space<vmem>>, vector<1x1x512xf32>
    %30 = vector.shape_cast %29 : vector<1x1x512xf32> to vector<1x512xf32>
    %cst_17 = arith.constant dense<0.000000e+00> : vector<8x512xf32>
    %31 = tpu.matmul %26, %28, %cst_17 {dimension_numbers = #tpu.dot_dimension_numbers<[1], [0], [0], [1], [0, 0, 1, 1], [], []>} : vector<8x128xf32>, vector<128x512xf32>, vector<8x512xf32> -> vector<8x512xf32>
    %32 = vector.broadcast %30 : vector<1x512xf32> to vector<8x512xf32>
    %33 = arith.addf %31, %32 : vector<8x512xf32>
    %34 = vector.extract_strided_slice %33 {offsets = [0, 0], sizes = [8, 128], strides = [1, 1]} : vector<8x512xf32> to vector<8x128xf32>
    %cst_18 = arith.constant 5.000000e-01 : f32
    %35 = vector.broadcast %cst_18 : f32 to vector<8x128xf32>
    %36 = arith.mulf %35, %34 : vector<8x128xf32>
    %37 = math.tanh %36 : vector<8x128xf32>
    %cst_19 = arith.constant 1.000000e+00 : f32
    %38 = vector.broadcast %cst_19 : f32 to vector<8x128xf32>
    %39 = arith.addf %37, %38 : vector<8x128xf32>
    %cst_20 = arith.constant 5.000000e-01 : f32
    %40 = vector.broadcast %cst_20 : f32 to vector<8x128xf32>
    %41 = arith.mulf %40, %39 : vector<8x128xf32>
    %42 = vector.extract_strided_slice %33 {offsets = [0, 256], sizes = [8, 128], strides = [1, 1]} : vector<8x512xf32> to vector<8x128xf32>
    %43 = math.tanh %42 : vector<8x128xf32>
    %44 = vector.extract_strided_slice %33 {offsets = [0, 384], sizes = [8, 128], strides = [1, 1]} : vector<8x512xf32> to vector<8x128xf32>
    %cst_21 = arith.constant 5.000000e-01 : f32
    %45 = vector.broadcast %cst_21 : f32 to vector<8x128xf32>
    %46 = arith.mulf %45, %44 : vector<8x128xf32>
    %47 = math.tanh %46 : vector<8x128xf32>
    %cst_22 = arith.constant 1.000000e+00 : f32
    %48 = vector.broadcast %cst_22 : f32 to vector<8x128xf32>
    %49 = arith.addf %47, %48 : vector<8x128xf32>
    %cst_23 = arith.constant 5.000000e-01 : f32
    %50 = vector.broadcast %cst_23 : f32 to vector<8x128xf32>
    %51 = arith.mulf %50, %49 : vector<8x128xf32>
    %52 = arith.mulf %41, %43 : vector<8x128xf32>
    %53 = math.tanh %52 : vector<8x128xf32>
    %54 = arith.mulf %51, %53 : vector<8x128xf32>
    %c1 = arith.constant 1 : index
    %c0_24 = arith.constant 0 : index
    %c0_25 = arith.constant 0 : index
    %55 = vector.load %arg3[%c1, %c0_24, %c0_25] : memref<3x128x512xf32, #tpu.memory_space<vmem>>, vector<1x128x512xf32>
    %56 = vector.shape_cast %55 : vector<1x128x512xf32> to vector<128x512xf32>
    %c1_26 = arith.constant 1 : index
    %c0_27 = arith.constant 0 : index
    %c0_28 = arith.constant 0 : index
    %57 = vector.load %arg4[%c1_26, %c0_27, %c0_28] : memref<3x1x512xf32, #tpu.memory_space<vmem>>, vector<1x1x512xf32>
    %58 = vector.shape_cast %57 : vector<1x1x512xf32> to vector<1x512xf32>
    %cst_29 = arith.constant dense<0.000000e+00> : vector<8x512xf32>
    %59 = tpu.matmul %54, %56, %cst_29 {dimension_numbers = #tpu.dot_dimension_numbers<[1], [0], [0], [1], [0, 0, 1, 1], [], []>} : vector<8x128xf32>, vector<128x512xf32>, vector<8x512xf32> -> vector<8x512xf32>
    %60 = vector.broadcast %58 : vector<1x512xf32> to vector<8x512xf32>
    %61 = arith.addf %59, %60 : vector<8x512xf32>
    %62 = vector.extract_strided_slice %61 {offsets = [0, 0], sizes = [8, 128], strides = [1, 1]} : vector<8x512xf32> to vector<8x128xf32>
    %cst_30 = arith.constant 5.000000e-01 : f32
    %63 = vector.broadcast %cst_30 : f32 to vector<8x128xf32>
    %64 = arith.mulf %63, %62 : vector<8x128xf32>
    %65 = math.tanh %64 : vector<8x128xf32>
    %cst_31 = arith.constant 1.000000e+00 : f32
    %66 = vector.broadcast %cst_31 : f32 to vector<8x128xf32>
    %67 = arith.addf %65, %66 : vector<8x128xf32>
    %cst_32 = arith.constant 5.000000e-01 : f32
    %68 = vector.broadcast %cst_32 : f32 to vector<8x128xf32>
    %69 = arith.mulf %68, %67 : vector<8x128xf32>
    %70 = vector.extract_strided_slice %61 {offsets = [0, 256], sizes = [8, 128], strides = [1, 1]} : vector<8x512xf32> to vector<8x128xf32>
    %71 = math.tanh %70 : vector<8x128xf32>
    %72 = vector.extract_strided_slice %61 {offsets = [0, 384], sizes = [8, 128], strides = [1, 1]} : vector<8x512xf32> to vector<8x128xf32>
    %cst_33 = arith.constant 5.000000e-01 : f32
    %73 = vector.broadcast %cst_33 : f32 to vector<8x128xf32>
    %74 = arith.mulf %73, %72 : vector<8x128xf32>
    %75 = math.tanh %74 : vector<8x128xf32>
    %cst_34 = arith.constant 1.000000e+00 : f32
    %76 = vector.broadcast %cst_34 : f32 to vector<8x128xf32>
    %77 = arith.addf %75, %76 : vector<8x128xf32>
    %cst_35 = arith.constant 5.000000e-01 : f32
    %78 = vector.broadcast %cst_35 : f32 to vector<8x128xf32>
    %79 = arith.mulf %78, %77 : vector<8x128xf32>
    %80 = arith.mulf %69, %71 : vector<8x128xf32>
    %81 = math.tanh %80 : vector<8x128xf32>
    %82 = arith.mulf %79, %81 : vector<8x128xf32>
    %c2 = arith.constant 2 : index
    %c0_36 = arith.constant 0 : index
    %c0_37 = arith.constant 0 : index
    %83 = vector.load %arg3[%c2, %c0_36, %c0_37] : memref<3x128x512xf32, #tpu.memory_space<vmem>>, vector<1x128x512xf32>
    %84 = vector.shape_cast %83 : vector<1x128x512xf32> to vector<128x512xf32>
    %c2_38 = arith.constant 2 : index
    %c0_39 = arith.constant 0 : index
    %c0_40 = arith.constant 0 : index
    %85 = vector.load %arg4[%c2_38, %c0_39, %c0_40] : memref<3x1x512xf32, #tpu.memory_space<vmem>>, vector<1x1x512xf32>
    %86 = vector.shape_cast %85 : vector<1x1x512xf32> to vector<1x512xf32>
    %cst_41 = arith.constant dense<0.000000e+00> : vector<8x512xf32>
    %87 = tpu.matmul %82, %84, %cst_41 {dimension_numbers = #tpu.dot_dimension_numbers<[1], [0], [0], [1], [0, 0, 1, 1], [], []>} : vector<8x128xf32>, vector<128x512xf32>, vector<8x512xf32> -> vector<8x512xf32>
    %88 = vector.broadcast %86 : vector<1x512xf32> to vector<8x512xf32>
    %89 = arith.addf %87, %88 : vector<8x512xf32>
    %90 = vector.extract_strided_slice %89 {offsets = [0, 0], sizes = [8, 128], strides = [1, 1]} : vector<8x512xf32> to vector<8x128xf32>
    %cst_42 = arith.constant 5.000000e-01 : f32
    %91 = vector.broadcast %cst_42 : f32 to vector<8x128xf32>
    %92 = arith.mulf %91, %90 : vector<8x128xf32>
    %93 = math.tanh %92 : vector<8x128xf32>
    %cst_43 = arith.constant 1.000000e+00 : f32
    %94 = vector.broadcast %cst_43 : f32 to vector<8x128xf32>
    %95 = arith.addf %93, %94 : vector<8x128xf32>
    %cst_44 = arith.constant 5.000000e-01 : f32
    %96 = vector.broadcast %cst_44 : f32 to vector<8x128xf32>
    %97 = arith.mulf %96, %95 : vector<8x128xf32>
    %98 = vector.extract_strided_slice %89 {offsets = [0, 256], sizes = [8, 128], strides = [1, 1]} : vector<8x512xf32> to vector<8x128xf32>
    %99 = math.tanh %98 : vector<8x128xf32>
    %100 = vector.extract_strided_slice %89 {offsets = [0, 384], sizes = [8, 128], strides = [1, 1]} : vector<8x512xf32> to vector<8x128xf32>
    %cst_45 = arith.constant 5.000000e-01 : f32
    %101 = vector.broadcast %cst_45 : f32 to vector<8x128xf32>
    %102 = arith.mulf %101, %100 : vector<8x128xf32>
    %103 = math.tanh %102 : vector<8x128xf32>
    %cst_46 = arith.constant 1.000000e+00 : f32
    %104 = vector.broadcast %cst_46 : f32 to vector<8x128xf32>
    %105 = arith.addf %103, %104 : vector<8x128xf32>
    %cst_47 = arith.constant 5.000000e-01 : f32
    %106 = vector.broadcast %cst_47 : f32 to vector<8x128xf32>
    %107 = arith.mulf %106, %105 : vector<8x128xf32>
    %108 = arith.mulf %97, %99 : vector<8x128xf32>
    %109 = math.tanh %108 : vector<8x128xf32>
    %110 = arith.mulf %107, %109 : vector<8x128xf32>
    %c0_48 = arith.constant 0 : index
    %c0_49 = arith.constant 0 : index
    %111 = vector.load %arg5[%c0_48, %c0_49] : memref<128x128xf32, #tpu.memory_space<vmem>>, vector<128x128xf32>
    %cst_50 = arith.constant dense<0.000000e+00> : vector<8x128xf32>
    %112 = tpu.matmul %110, %111, %cst_50 {dimension_numbers = #tpu.dot_dimension_numbers<[1], [0], [0], [1], [0, 0, 1, 1], [], []>} : vector<8x128xf32>, vector<128x128xf32>, vector<8x128xf32> -> vector<8x128xf32>
    %c0_51 = arith.constant 0 : index
    %c0_52 = arith.constant 0 : index
    %113 = vector.load %arg6[%c0_51, %c0_52] : memref<1x128xf32, #tpu.memory_space<vmem>>, vector<1x128xf32>
    %114 = vector.broadcast %113 : vector<1x128xf32> to vector<8x128xf32>
    %115 = arith.addf %112, %114 : vector<8x128xf32>
    %cst_53 = arith.constant dense<0xFF800000> : vector<8xf32>
    %116 = vector.multi_reduction <maximumf>, %115, %cst_53 [1] : vector<8x128xf32> to vector<8xf32>
    %117 = vector.shape_cast %116 : vector<8xf32> to vector<8x1xf32>
    %118 = vector.broadcast %117 : vector<8x1xf32> to vector<8x128xf32>
    %119 = arith.subf %115, %118 : vector<8x128xf32>
    %120 = math.exp %119 : vector<8x128xf32>
    %cst_54 = arith.constant dense<0.000000e+00> : vector<8xf32>
    %121 = vector.multi_reduction <add>, %120, %cst_54 [1] : vector<8x128xf32> to vector<8xf32>
    %122 = vector.shape_cast %121 : vector<8xf32> to vector<8x1xf32>
    %123 = vector.broadcast %122 : vector<8x1xf32> to vector<8x128xf32>
    %124 = arith.divf %120, %123 : vector<8x128xf32>
    %c0_55 = arith.constant 0 : index
    %c0_56 = arith.constant 0 : index
    %125 = vector.load %arg7[%c0_55, %c0_56] : memref<8x128xf32, #tpu.memory_space<vmem>>, vector<8x128xf32>
    tpu.vector_store %arg7[%c0_55, %c0_56], %124 {strides = array<i32>} : memref<8x128xf32, #tpu.memory_space<vmem>>, vector<8x128xf32>,
    return
  }
}

</mosaic_0001>

<llo_original>
// kernel: lstm_model_forward.1
$region0: #{lstm_model_forward.1}
  #allocation0 [shape = 'u32[]', space=smem, size = 0x4, offset = 0x4, fixed_abs, tag = 'smem constant byte address 0x4 - core index']
  #allocation1 [shape = 'u32[144,128]{1,0:T(1,128)}', space=vmem, size = 0x12000, scoped, tag = 'internal scratch']
  %s0 = inlined_call_operand.vmem [shape: f32[8,16], index: 0, kind: input, shape index: {}]
  %s1 = inlined_call_operand.hbm [shape: f32[16,512], index: 1, kind: input, shape index: {}]
  %s2 = inlined_call_operand.vmem [shape: f32[1,512], index: 2, kind: input, shape index: {}]
  %s3 = inlined_call_operand.hbm [shape: f32[3,128,512], index: 3, kind: input, shape index: {}]
  %s4 = inlined_call_operand.vmem [shape: f32[3,1,512], index: 4, kind: input, shape index: {}]
  %s5 = inlined_call_operand.hbm [shape: f32[128,128], index: 5, kind: input, shape index: {}]
  %s6 = inlined_call_operand.vmem [shape: f32[1,128], index: 6, kind: input, shape index: {}]
  %s7 = inlined_call_operand.vmem [shape: f32[8,128], index: 7, kind: output, shape index: {}]
  %s8 = sld [smem:[#allocation0]]
  $region50: #{lstm_model_forward.1} parent=0
    _
  %s10 = ssub.s32 1, %s8
  %s11 = scalar_select 0, %s10, %s8
  $region1: #{lstm_model_forward.1} parent=0
    #allocation2 [shape = 'u8[32768]{0}', space=vmem, size = 0x8000, scoped, tag = 'input window, operand 1, single buffered']
    #allocation3 [shape = 's32[1]{0}', space=sflag, size = 0x4, scoped, tag = 'scoped memory for lstm_model_forward.1']
    #allocation4 [shape = 'u8[786432]{0}', space=vmem, size = 0xc0000, scoped, tag = 'input window, operand 3, single buffered']
    #allocation5 [shape = 's32[1]{0}', space=sflag, size = 0x4, scoped, tag = 'scoped memory for lstm_model_forward.1']
    #allocation6 [shape = 'u8[65536]{0}', space=vmem, size = 0x10000, scoped, tag = 'input window, operand 5, single buffered']
    %12 = vsyncpa [#allocation3], 0
    %13 = vsyncpa [#allocation5], 0
    // Predicated region
    $region2: #{lstm_model_forward.1} parent=1 // pred_check
      _
    $region3: #{lstm_model_forward.1} parent=1 // pred_check_branch
      %15 = sbr.rel (0) target = $region5
    $region4: #{lstm_model_forward.1} parent=1 // pred_region
      _
    $region5: #{lstm_model_forward.1} parent=1 // pred_fallthru
      _
    // Predicated region
    $region6: #{lstm_model_forward.1} parent=1 // pred_check
      _
    $region7: #{lstm_model_forward.1} parent=1 // pred_check_branch
      %17 = sbr.rel (0) target = $region9
    $region8: #{lstm_model_forward.1} parent=1 // pred_region
      %s19 = ssub.s32 1024, 1024
      %20 = vsyncadd [#allocation3], %s19
      %s21 = sshll.u32 [#allocation2], 4
      %s22 = int_to_ptr.vmem [resolvable:$true] %s21
      %27 = dma.hbm_to_vmem [thread:$0]  %s1, 1024, %s22, [#allocation3], 512, 512, 32
    $region9: #{lstm_model_forward.1} parent=1 // pred_fallthru
      _
    // Predicated region
    $region10: #{lstm_model_forward.1} parent=1 // pred_check
      _
    $region11: #{lstm_model_forward.1} parent=1 // pred_check_branch
      %29 = sbr.rel (0) target = $region13
    $region12: #{lstm_model_forward.1} parent=1 // pred_region
      _
    $region13: #{lstm_model_forward.1} parent=1 // pred_fallthru
      _
    // Predicated region
    $region14: #{lstm_model_forward.1} parent=1 // pred_check
      _
    $region15: #{lstm_model_forward.1} parent=1 // pred_check_branch
      %31 = sbr.rel (0) target = $region17
    $region16: #{lstm_model_forward.1} parent=1 // pred_region
      %s33 = ssub.s32 24576, 24576
      %34 = vsyncadd [#allocation5], %s33
      %s35 = sshll.u32 [#allocation4], 4
      %s36 = int_to_ptr.vmem [resolvable:$true] %s35
      %41 = dma.hbm_to_vmem [thread:$0]  %s3, 24576, %s36, [#allocation5], 512, 512, 32
    $region17: #{lstm_model_forward.1} parent=1 // pred_fallthru
      _
    // Predicated region
    $region18: #{lstm_model_forward.1} parent=1 // pred_check
      _
    $region19: #{lstm_model_forward.1} parent=1 // pred_check_branch
      %43 = sbr.rel (0) target = $region21
    $region20: #{lstm_model_forward.1} parent=1 // pred_region
      _
    $region21: #{lstm_model_forward.1} parent=1 // pred_fallthru
      _
    // Predicated region
    $region22: #{lstm_model_forward.1} parent=1 // pred_check
      _
    $region23: #{lstm_model_forward.1} parent=1 // pred_check_branch
      %45 = sbr.rel (0) target = $region25
    $region24: #{lstm_model_forward.1} parent=1 // pred_region
      %s47 = ssub.s32 2048, 2048
      %48 = vsyncadd [#allocation5], %s47
      %s49 = sshll.u32 [#allocation6], 4
      %s50 = int_to_ptr.vmem [resolvable:$true] %s49
      %55 = dma.hbm_to_vmem [thread:$0]  %s5, 2048, %s50, [#allocation5], 128, 128, 8
    $region25: #{lstm_model_forward.1} parent=1 // pred_fallthru
      _
    // Predicated region
    $region26: #{lstm_model_forward.1} parent=1 // pred_check
      _
    $region27: #{lstm_model_forward.1} parent=1 // pred_check_branch
      %57 = sbr.rel (0) target = $region29
    $region28: #{lstm_model_forward.1} parent=1 // pred_region
      _
    $region29: #{lstm_model_forward.1} parent=1 // pred_fallthru
      _
    // Predicated region
    $region30: #{lstm_model_forward.1} parent=1 // pred_check
      _
    $region31: #{lstm_model_forward.1} parent=1 // pred_check_branch
      %59 = sbr.rel (0) target = $region33
    $region32: #{lstm_model_forward.1} parent=1 // pred_region
      %60 = dma.done [#allocation3], 1024
    $region33: #{lstm_model_forward.1} parent=1 // pred_fallthru
      _
    // Predicated region
    $region34: #{lstm_model_forward.1} parent=1 // pred_check
      _
    $region35: #{lstm_model_forward.1} parent=1 // pred_check_branch
      %62 = sbr.rel (0) target = $region37
    $region36: #{lstm_model_forward.1} parent=1 // pred_region
      %63 = dma.done [#allocation5], 24576
    $region37: #{lstm_model_forward.1} parent=1 // pred_fallthru
      _
    // Predicated region
    $region38: #{lstm_model_forward.1} parent=1 // pred_check
      _
    $region39: #{lstm_model_forward.1} parent=1 // pred_check_branch
      %65 = sbr.rel (0) target = $region41
    $region40: #{lstm_model_forward.1} parent=1 // pred_region
      %66 = dma.done [#allocation5], 2048
    $region41: #{lstm_model_forward.1} parent=1 // pred_fallthru
      _
    %v67 = vld [vmem:[%s0] sm:$0xff]
    %v68 = vld [vmem:[#allocation2] sm:$0xff]
    %v69 = vld [vmem:[#allocation2 + $0x8] sm:$0xff]
    %v70 = vld [vmem:[#allocation2 + $0x10] sm:$0xff]
    %v71 = vld [vmem:[#allocation2 + $0x18] sm:$0xff]
    %v72 = vld [vmem:[#allocation2 + $0x20] sm:$0xff]
    %v73 = vld [vmem:[#allocation2 + $0x28] sm:$0xff]
    %v74 = vld [vmem:[#allocation2 + $0x30] sm:$0xff]
    %v75 = vld [vmem:[#allocation2 + $0x38] sm:$0xff]
    %v76 = vld [vmem:[%s2] sm:$0xf]
    %v78 = vlaneseq
    %v79 = vshrl.u32 %v78, 7
    %v80 = vsub.s32 0, %v79
    %v81 = vrot.slane %v76, %v80
    %v82 = vlaneseq
    %v83 = vshrl.u32 %v82, 7
    %v84 = vsub.s32 2, %v83
    %v85 = vrot.slane %v76, %v84
    %v86 = vlaneseq
    %v87 = vshrl.u32 %v86, 7
    %v88 = vsub.s32 3, %v87
    %v89 = vrot.slane %v76, %v88
    %vm93 = vcmask 130048
    %v95 = vsel %vm93, %v67, 0
    %97 = vmatprep.subr.mxu0 %v69
    %98 = vmatpush1.msra.mxu0 %v68
    %99 = vmatprep.subr.mxu0 %v73
    %100 = vmatpush1.msra.mxu0 %v72
    %101 = vmatprep.subr.mxu0 0.0
    %102 = vmatpush1.msra.mxu0 0.0
    %103 = vmatprep.subr.mxu0 0.0
    %104 = vmatpush1.msra.mxu0 0.0
    %105 = vmatprep.subr.mxu0 0.0
    %106 = vmatpush1.msra.mxu0 0.0
    %107 = vmatprep.subr.mxu0 0.0
    %108 = vmatpush1.msra.mxu0 0.0
    %109 = vmatprep.subr.mxu0 0.0
    %110 = vmatpush1.msra.mxu0 0.0
    %111 = vmatprep.subr.mxu0 0.0
    %112 = vmatpush1.msra.mxu0 0.0
    %113 = vmatprep.subr.mxu0 0.0
    %114 = vmatpush1.msra.mxu0 0.0
    %115 = vmatprep.subr.mxu0 0.0
    %116 = vmatpush1.msra.mxu0 0.0
    %117 = vmatprep.subr.mxu0 0.0
    %118 = vmatpush1.msra.mxu0 0.0
    %119 = vmatprep.subr.mxu0 0.0
    %120 = vmatpush1.msra.mxu0 0.0
    %121 = vmatprep.subr.mxu0 0.0
    %122 = vmatpush1.msra.mxu0 0.0
    %123 = vmatprep.subr.mxu0 0.0
    %124 = vmatpush1.msra.mxu0 0.0
    %125 = vmatprep.subr.mxu0 0.0
    %126 = vmatpush1.msra.mxu0 0.0
    %127 = vmatprep.subr.mxu0 0.0
    %128 = vmatpush1.msra.mxu0 0.0
    %129 = vmatprep.subr.mxu0 0.0
    %130 = vmatpush1.msra.mxu0 0.0
    %131 = vmatprep.subr.mxu0 0.0
    %132 = vmatpush1.msra.mxu0 0.0
    %133 = vmatprep.subr.mxu0 0.0
    %134 = vmatpush1.msra.mxu0 0.0
    %135 = vmatprep.subr.mxu0 0.0
    %136 = vmatpush1.msra.mxu0 0.0
    %137 = vmatprep.subr.mxu0 0.0
    %138 = vmatpush1.msra.mxu0 0.0
    %139 = vmatprep.subr.mxu0 0.0
    %140 = vmatpush1.msra.mxu0 0.0
    %141 = vmatprep.subr.mxu0 0.0
    %142 = vmatpush1.msra.mxu0 0.0
    %143 = vmatprep.subr.mxu0 0.0
    %144 = vmatpush1.msra.mxu0 0.0
    %145 = vmatprep.subr.mxu0 0.0
    %146 = vmatpush1.msra.mxu0 0.0
    %147 = vmatprep.subr.mxu0 0.0
    %148 = vmatpush1.msra.mxu0 0.0
    %149 = vmatprep.subr.mxu0 0.0
    %150 = vmatpush1.msra.mxu0 0.0
    %151 = vmatprep.subr.mxu0 0.0
    %152 = vmatpush1.msra.mxu0 0.0
    %153 = vmatprep.subr.mxu0 0.0
    %154 = vmatpush1.msra.mxu0 0.0
    %155 = vmatprep.subr.mxu0 0.0
    %156 = vmatpush1.msra.mxu0 0.0
    %157 = vmatprep.subr.mxu0 0.0
    %158 = vmatpush1.msra.mxu0 0.0
    %159 = vmatprep.subr.mxu0 0.0
    %160 = vmatpush1.msra.mxu0 0.0
    %161 = vmatprep.mubr.f32.mxu0 0.0
    %162 = vmatmul.mubr.f32.gmra.mrb[0].mxu0 %v95
    %v163 = vpop.f32.mrb[0].mxu0
    %v164 = vadd.f32 %v81, %v163
    %v165 = vpop.f32.mrb[0].mxu0
    %166 = vdwg.mxu0
    %167 = vmatprep.subr.mxu0 %v71
    %168 = vmatpush1.msra.mxu0 %v70
    %169 = vmatprep.subr.mxu0 %v75
    %170 = vmatpush1.msra.mxu0 %v74
    %171 = vmatprep.subr.mxu0 0.0
    %172 = vmatpush1.msra.mxu0 0.0
    %173 = vmatprep.subr.mxu0 0.0
    %174 = vmatpush1.msra.mxu0 0.0
    %175 = vmatprep.subr.mxu0 0.0
    %176 = vmatpush1.msra.mxu0 0.0
    %177 = vmatprep.subr.mxu0 0.0
    %178 = vmatpush1.msra.mxu0 0.0
    %179 = vmatprep.subr.mxu0 0.0
    %180 = vmatpush1.msra.mxu0 0.0
    %181 = vmatprep.subr.mxu0 0.0
    %182 = vmatpush1.msra.mxu0 0.0
    %183 = vmatprep.subr.mxu0 0.0
    %184 = vmatpush1.msra.mxu0 0.0
    %185 = vmatprep.subr.mxu0 0.0
    %186 = vmatpush1.msra.mxu0 0.0
    %187 = vmatprep.subr.mxu0 0.0
    %188 = vmatpush1.msra.mxu0 0.0
    %189 = vmatprep.subr.mxu0 0.0
    %190 = vmatpush1.msra.mxu0 0.0
    %191 = vmatprep.subr.mxu0 0.0
    %192 = vmatpush1.msra.mxu0 0.0
    %193 = vmatprep.subr.mxu0 0.0
    %194 = vmatpush1.msra.mxu0 0.0
    %195 = vmatprep.subr.mxu0 0.0
    %196 = vmatpush1.msra.mxu0 0.0
    %197 = vmatprep.subr.mxu0 0.0
    %198 = vmatpush1.msra.mxu0 0.0
    %199 = vmatprep.subr.mxu0 0.0
    %200 = vmatpush1.msra.mxu0 0.0
    %201 = vmatprep.subr.mxu0 0.0
    %202 = vmatpush1.msra.mxu0 0.0
    %203 = vmatprep.subr.mxu0 0.0
    %204 = vmatpush1.msra.mxu0 0.0
    %205 = vmatprep.subr.mxu0 0.0
    %206 = vmatpush1.msra.mxu0 0.0
    %207 = vmatprep.subr.mxu0 0.0
    %208 = vmatpush1.msra.mxu0 0.0
    %209 = vmatprep.subr.mxu0 0.0
    %210 = vmatpush1.msra.mxu0 0.0
    %211 = vmatprep.subr.mxu0 0.0
    %212 = vmatpush1.msra.mxu0 0.0
    %213 = vmatprep.subr.mxu0 0.0
    %214 = vmatpush1.msra.mxu0 0.0
    %215 = vmatprep.subr.mxu0 0.0
    %216 = vmatpush1.msra.mxu0 0.0
    %217 = vmatprep.subr.mxu0 0.0
    %218 = vmatpush1.msra.mxu0 0.0
    %219 = vmatprep.subr.mxu0 0.0
    %220 = vmatpush1.msra.mxu0 0.0
    %221 = vmatprep.subr.mxu0 0.0
    %222 = vmatpush1.msra.mxu0 0.0
    %223 = vmatprep.subr.mxu0 0.0
    %224 = vmatpush1.msra.mxu0 0.0
    %225 = vmatprep.subr.mxu0 0.0
    %226 = vmatpush1.msra.mxu0 0.0
    %227 = vmatprep.subr.mxu0 0.0
    %228 = vmatpush1.msra.mxu0 0.0
    %229 = vmatprep.subr.mxu0 0.0
    %230 = vmatpush1.msra.mxu0 0.0
    %231 = vmatprep.mubr.f32.mxu0 0.0
    %232 = vmatmul.mubr.f32.gmra.mrb[0].mxu0 %v95
    %v233 = vpop.f32.mrb[0].mxu0
    %v234 = vadd.f32 %v85, %v233
    %v235 = vpop.f32.mrb[0].mxu0
    %v236 = vadd.f32 %v89, %v235
    %237 = vdwg.mxu0
    %v238 = vmul.f32 %v164, 0.5
    %v239 = vtanh.pop %v238
    %v240 = vadd.f32 %v239, 1.0
    %v241 = vmul.f32 %v240, 0.5
    %v242 = vtanh.pop %v234
    %v243 = vmul.f32 %v236, 0.5
    %v244 = vtanh.pop %v243
    %v245 = vadd.f32 %v244, 1.0
    %v246 = vmul.f32 %v245, 0.5
    %v247 = vmul.f32 %v241, %v242
    %v248 = vtanh.pop %v247
    %v249 = vmul.f32 %v246, %v248
    %v250 = vld [vmem:[#allocation4] sm:$0xff]
    %v251 = vld [vmem:[#allocation4 + $0x8] sm:$0xff]
    %v252 = vld [vmem:[#allocation4 + $0x10] sm:$0xff]
    %v253 = vld [vmem:[#allocation4 + $0x18] sm:$0xff]
    %v254 = vld [vmem:[#allocation4 + $0x20] sm:$0xff]
    %v255 = vld [vmem:[#allocation4 + $0x28] sm:$0xff]
    %v256 = vld [vmem:[#allocation4 + $0x30] sm:$0xff]
    %v257 = vld [vmem:[#allocation4 + $0x38] sm:$0xff]
    %v258 = vld [vmem:[#allocation4 + $0x40] sm:$0xff]
    %v259 = vld [vmem:[#allocation4 + $0x48] sm:$0xff]
    %v260 = vld [vmem:[#allocation4 + $0x50] sm:$0xff]
    %v261 = vld [vmem:[#allocation4 + $0x58] sm:$0xff]
    %v262 = vld [vmem:[#allocation4 + $0x60] sm:$0xff]
    %v263 = vld [vmem:[#allocation4 + $0x68] sm:$0xff]
    %v264 = vld [vmem:[#allocation4 + $0x70] sm:$0xff]
    %v265 = vld [vmem:[#allocation4 + $0x78] sm:$0xff]
    %v266 = vld [vmem:[#allocation4 + $0x80] sm:$0xff]
    %v267 = vld [vmem:[#allocation4 + $0x88] sm:$0xff]
    %v268 = vld [vmem:[#allocation4 + $0x90] sm:$0xff]
    %v269 = vld [vmem:[#allocation4 + $0x98] sm:$0xff]
    %v270 = vld [vmem:[#allocation4 + $0xa0] sm:$0xff]
    %v271 = vld [vmem:[#allocation4 + $0xa8] sm:$0xff]
    %v272 = vld [vmem:[#allocation4 + $0xb0] sm:$0xff]
    %v273 = vld [vmem:[#allocation4 + $0xb8] sm:$0xff]
    %v274 = vld [vmem:[#allocation4 + $0xc0] sm:$0xff]
    %v275 = vld [vmem:[#allocation4 + $0xc8] sm:$0xff]
    %v276 = vld [vmem:[#allocation4 + $0xd0] sm:$0xff]
    %v277 = vld [vmem:[#allocation4 + $0xd8] sm:$0xff]
    %v278 = vld [vmem:[#allocation4 + $0xe0] sm:$0xff]
    %v279 = vld [vmem:[#allocation4 + $0xe8] sm:$0xff]
    %v280 = vld [vmem:[#allocation4 + $0xf0] sm:$0xff]
    %v281 = vld [vmem:[#allocation4 + $0xf8] sm:$0xff]
    %v282 = vld [vmem:[#allocation4 + $0x100] sm:$0xff]
    %v283 = vld [vmem:[#allocation4 + $0x108] sm:$0xff]
    %v284 = vld [vmem:[#allocation4 + $0x110] sm:$0xff]
    %v285 = vld [vmem:[#allocation4 + $0x118] sm:$0xff]
    %v286 = vld [vmem:[#allocation4 + $0x120] sm:$0xff]
    %v287 = vld [vmem:[#allocation4 + $0x128] sm:$0xff]
    %v288 = vld [vmem:[#allocation4 + $0x130] sm:$0xff]
    %v289 = vld [vmem:[#allocation4 + $0x138] sm:$0xff]
    %v290 = vld [vmem:[#allocation4 + $0x140] sm:$0xff]
    %v291 = vld [vmem:[#allocation4 + $0x148] sm:$0xff]
    %v292 = vld [vmem:[#allocation4 + $0x150] sm:$0xff]
    %v293 = vld [vmem:[#allocation4 + $0x158] sm:$0xff]
    %v294 = vld [vmem:[#allocation4 + $0x160] sm:$0xff]
    %v295 = vld [vmem:[#allocation4 + $0x168] sm:$0xff]
    %v296 = vld [vmem:[#allocation4 + $0x170] sm:$0xff]
    %v297 = vld [vmem:[#allocation4 + $0x178] sm:$0xff]
    %v298 = vld [vmem:[#allocation4 + $0x180] sm:$0xff]
    %v299 = vld [vmem:[#allocation4 + $0x188] sm:$0xff]
    %v300 = vld [vmem:[#allocation4 + $0x190] sm:$0xff]
    %v301 = vld [vmem:[#allocation4 + $0x198] sm:$0xff]
    %v302 = vld [vmem:[#allocation4 + $0x1a0] sm:$0xff]
    %v303 = vld [vmem:[#allocation4 + $0x1a8] sm:$0xff]
    %v304 = vld [vmem:[#allocation4 + $0x1b0] sm:$0xff]
    %v305 = vld [vmem:[#allocation4 + $0x1b8] sm:$0xff]
    %v306 = vld [vmem:[#allocation4 + $0x1c0] sm:$0xff]
    %v307 = vld [vmem:[#allocation4 + $0x1c8] sm:$0xff]
    %v308 = vld [vmem:[#allocation4 + $0x1d0] sm:$0xff]
    %v309 = vld [vmem:[#allocation4 + $0x1d8] sm:$0xff]
    %v310 = vld [vmem:[#allocation4 + $0x1e0] sm:$0xff]
    %v311 = vld [vmem:[#allocation4 + $0x1e8] sm:$0xff]
    %v312 = vld [vmem:[#allocation4 + $0x1f0] sm:$0xff]
    %v313 = vld [vmem:[#allocation4 + $0x1f8] sm:$0xff]
    %v314 = vld [vmem:[%s4] sm:$0xf]
    %v316 = vlaneseq
    %v317 = vshrl.u32 %v316, 7
    %v318 = vsub.s32 0, %v317
    %v319 = vrot.slane %v314, %v318
    %v320 = vlaneseq
    %v321 = vshrl.u32 %v320, 7
    %v322 = vsub.s32 2, %v321
    %v323 = vrot.slane %v314, %v322
    %v324 = vlaneseq
    %v325 = vshrl.u32 %v324, 7
    %v326 = vsub.s32 3, %v325
    %v327 = vrot.slane %v314, %v326
    %331 = vmatprep.subr.mxu0 %v251
    %332 = vmatpush1.msra.mxu0 %v250
    %333 = vmatprep.subr.mxu0 %v255
    %334 = vmatpush1.msra.mxu0 %v254
    %335 = vmatprep.subr.mxu0 %v259
    %336 = vmatpush1.msra.mxu0 %v258
    %337 = vmatprep.subr.mxu0 %v263
    %338 = vmatpush1.msra.mxu0 %v262
    %339 = vmatprep.subr.mxu0 %v267
    %340 = vmatpush1.msra.mxu0 %v266
    %341 = vmatprep.subr.mxu0 %v271
    %342 = vmatpush1.msra.mxu0 %v270
    %343 = vmatprep.subr.mxu0 %v275
    %344 = vmatpush1.msra.mxu0 %v274
    %345 = vmatprep.subr.mxu0 %v279
    %346 = vmatpush1.msra.mxu0 %v278
    %347 = vmatprep.subr.mxu0 %v283
    %348 = vmatpush1.msra.mxu0 %v282
    %349 = vmatprep.subr.mxu0 %v287
    %350 = vmatpush1.msra.mxu0 %v286
    %351 = vmatprep.subr.mxu0 %v291
    %352 = vmatpush1.msra.mxu0 %v290
    %353 = vmatprep.subr.mxu0 %v295
    %354 = vmatpush1.msra.mxu0 %v294
    %355 = vmatprep.subr.mxu0 %v299
    %356 = vmatpush1.msra.mxu0 %v298
    %357 = vmatprep.subr.mxu0 %v303
    %358 = vmatpush1.msra.mxu0 %v302
    %359 = vmatprep.subr.mxu0 %v307
    %360 = vmatpush1.msra.mxu0 %v306
    %361 = vmatprep.subr.mxu0 %v311
    %362 = vmatpush1.msra.mxu0 %v310
    %363 = vmatprep.subr.mxu0 0.0
    %364 = vmatpush1.msra.mxu0 0.0
    %365 = vmatprep.subr.mxu0 0.0
    %366 = vmatpush1.msra.mxu0 0.0
    %367 = vmatprep.subr.mxu0 0.0
    %368 = vmatpush1.msra.mxu0 0.0
    %369 = vmatprep.subr.mxu0 0.0
    %370 = vmatpush1.msra.mxu0 0.0
    %371 = vmatprep.subr.mxu0 0.0
    %372 = vmatpush1.msra.mxu0 0.0
    %373 = vmatprep.subr.mxu0 0.0
    %374 = vmatpush1.msra.mxu0 0.0
    %375 = vmatprep.subr.mxu0 0.0
    %376 = vmatpush1.msra.mxu0 0.0
    %377 = vmatprep.subr.mxu0 0.0
    %378 = vmatpush1.msra.mxu0 0.0
    %379 = vmatprep.subr.mxu0 0.0
    %380 = vmatpush1.msra.mxu0 0.0
    %381 = vmatprep.subr.mxu0 0.0
    %382 = vmatpush1.msra.mxu0 0.0
    %383 = vmatprep.subr.mxu0 0.0
    %384 = vmatpush1.msra.mxu0 0.0
    %385 = vmatprep.subr.mxu0 0.0
    %386 = vmatpush1.msra.mxu0 0.0
    %387 = vmatprep.subr.mxu0 0.0
    %388 = vmatpush1.msra.mxu0 0.0
    %389 = vmatprep.subr.mxu0 0.0
    %390 = vmatpush1.msra.mxu0 0.0
    %391 = vmatprep.subr.mxu0 0.0
    %392 = vmatpush1.msra.mxu0 0.0
    %393 = vmatprep.subr.mxu0 0.0
    %394 = vmatpush1.msra.mxu0 0.0
    %395 = vmatprep.mubr.f32.mxu0 0.0
    %396 = vmatmul.mubr.f32.gmra.mrb[0].mxu0 %v249
    %v397 = vpop.f32.mrb[0].mxu0
    %v398 = vadd.f32 %v319, %v397
    %v399 = vpop.f32.mrb[0].mxu0
    %400 = vdwg.mxu0
    %401 = vmatprep.subr.mxu0 %v253
    %402 = vmatpush1.msra.mxu0 %v252
    %403 = vmatprep.subr.mxu0 %v257
    %404 = vmatpush1.msra.mxu0 %v256
    %405 = vmatprep.subr.mxu0 %v261
    %406 = vmatpush1.msra.mxu0 %v260
    %407 = vmatprep.subr.mxu0 %v265
    %408 = vmatpush1.msra.mxu0 %v264
    %409 = vmatprep.subr.mxu0 %v269
    %410 = vmatpush1.msra.mxu0 %v268
    %411 = vmatprep.subr.mxu0 %v273
    %412 = vmatpush1.msra.mxu0 %v272
    %413 = vmatprep.subr.mxu0 %v277
    %414 = vmatpush1.msra.mxu0 %v276
    %415 = vmatprep.subr.mxu0 %v281
    %416 = vmatpush1.msra.mxu0 %v280
    %417 = vmatprep.subr.mxu0 %v285
    %418 = vmatpush1.msra.mxu0 %v284
    %419 = vmatprep.subr.mxu0 %v289
    %420 = vmatpush1.msra.mxu0 %v288
    %421 = vmatprep.subr.mxu0 %v293
    %422 = vmatpush1.msra.mxu0 %v292
    %423 = vmatprep.subr.mxu0 %v297
    %424 = vmatpush1.msra.mxu0 %v296
    %425 = vmatprep.subr.mxu0 %v301
    %426 = vmatpush1.msra.mxu0 %v300
    %427 = vmatprep.subr.mxu0 %v305
    %428 = vmatpush1.msra.mxu0 %v304
    %429 = vmatprep.subr.mxu0 %v309
    %430 = vmatpush1.msra.mxu0 %v308
    %431 = vmatprep.subr.mxu0 %v313
    %432 = vmatpush1.msra.mxu0 %v312
    %433 = vmatprep.subr.mxu0 0.0
    %434 = vmatpush1.msra.mxu0 0.0
    %435 = vmatprep.subr.mxu0 0.0
    %436 = vmatpush1.msra.mxu0 0.0
    %437 = vmatprep.subr.mxu0 0.0
    %438 = vmatpush1.msra.mxu0 0.0
    %439 = vmatprep.subr.mxu0 0.0
    %440 = vmatpush1.msra.mxu0 0.0
    %441 = vmatprep.subr.mxu0 0.0
    %442 = vmatpush1.msra.mxu0 0.0
    %443 = vmatprep.subr.mxu0 0.0
    %444 = vmatpush1.msra.mxu0 0.0
    %445 = vmatprep.subr.mxu0 0.0
    %446 = vmatpush1.msra.mxu0 0.0
    %447 = vmatprep.subr.mxu0 0.0
    %448 = vmatpush1.msra.mxu0 0.0
    %449 = vmatprep.subr.mxu0 0.0
    %450 = vmatpush1.msra.mxu0 0.0
    %451 = vmatprep.subr.mxu0 0.0
    %452 = vmatpush1.msra.mxu0 0.0
    %453 = vmatprep.subr.mxu0 0.0
    %454 = vmatpush1.msra.mxu0 0.0
    %455 = vmatprep.subr.mxu0 0.0
    %456 = vmatpush1.msra.mxu0 0.0
    %457 = vmatprep.subr.mxu0 0.0
    %458 = vmatpush1.msra.mxu0 0.0
    %459 = vmatprep.subr.mxu0 0.0
    %460 = vmatpush1.msra.mxu0 0.0
    %461 = vmatprep.subr.mxu0 0.0
    %462 = vmatpush1.msra.mxu0 0.0
    %463 = vmatprep.subr.mxu0 0.0
    %464 = vmatpush1.msra.mxu0 0.0
    %465 = vmatprep.mubr.f32.mxu0 0.0
    %466 = vmatmul.mubr.f32.gmra.mrb[0].mxu0 %v249
    %v467 = vpop.f32.mrb[0].mxu0
    %v468 = vadd.f32 %v323, %v467
    %v469 = vpop.f32.mrb[0].mxu0
    %v470 = vadd.f32 %v327, %v469
    %471 = vdwg.mxu0
    %v472 = vmul.f32 %v398, 0.5
    %v473 = vtanh.pop %v472
    %v474 = vadd.f32 %v473, 1.0
    %v475 = vmul.f32 %v474, 0.5
    %v476 = vtanh.pop %v468
    %v477 = vmul.f32 %v470, 0.5
    %v478 = vtanh.pop %v477
    %v479 = vadd.f32 %v478, 1.0
    %v480 = vmul.f32 %v479, 0.5
    %v481 = vmul.f32 %v475, %v476
    %v482 = vtanh.pop %v481
    %v483 = vmul.f32 %v480, %v482
    %s484 = scalar_lea.vmem [#allocation4], 512
    %v485 = vld [vmem:[%s484] sm:$0xff]
    %v486 = vld [vmem:[%s484 + $0x8] sm:$0xff]
    %v487 = vld [vmem:[%s484 + $0x10] sm:$0xff]
    %v488 = vld [vmem:[%s484 + $0x18] sm:$0xff]
    %v489 = vld [vmem:[%s484 + $0x20] sm:$0xff]
    %v490 = vld [vmem:[%s484 + $0x28] sm:$0xff]
    %v491 = vld [vmem:[%s484 + $0x30] sm:$0xff]
    %v492 = vld [vmem:[%s484 + $0x38] sm:$0xff]
    %v493 = vld [vmem:[%s484 + $0x40] sm:$0xff]
    %v494 = vld [vmem:[%s484 + $0x48] sm:$0xff]
    %v495 = vld [vmem:[%s484 + $0x50] sm:$0xff]
    %v496 = vld [vmem:[%s484 + $0x58] sm:$0xff]
    %v497 = vld [vmem:[%s484 + $0x60] sm:$0xff]
    %v498 = vld [vmem:[%s484 + $0x68] sm:$0xff]
    %v499 = vld [vmem:[%s484 + $0x70] sm:$0xff]
    %v500 = vld [vmem:[%s484 + $0x78] sm:$0xff]
    %v501 = vld [vmem:[%s484 + $0x80] sm:$0xff]
    %v502 = vld [vmem:[%s484 + $0x88] sm:$0xff]
    %v503 = vld [vmem:[%s484 + $0x90] sm:$0xff]
    %v504 = vld [vmem:[%s484 + $0x98] sm:$0xff]
    %v505 = vld [vmem:[%s484 + $0xa0] sm:$0xff]
    %v506 = vld [vmem:[%s484 + $0xa8] sm:$0xff]
    %v507 = vld [vmem:[%s484 + $0xb0] sm:$0xff]
    %v508 = vld [vmem:[%s484 + $0xb8] sm:$0xff]
    %v509 = vld [vmem:[%s484 + $0xc0] sm:$0xff]
    %v510 = vld [vmem:[%s484 + $0xc8] sm:$0xff]
    %v511 = vld [vmem:[%s484 + $0xd0] sm:$0xff]
    %v512 = vld [vmem:[%s484 + $0xd8] sm:$0xff]
    %v513 = vld [vmem:[%s484 + $0xe0] sm:$0xff]
    %v514 = vld [vmem:[%s484 + $0xe8] sm:$0xff]
    %v515 = vld [vmem:[%s484 + $0xf0] sm:$0xff]
    %v516 = vld [vmem:[%s484 + $0xf8] sm:$0xff]
    %v517 = vld [vmem:[%s484 + $0x100] sm:$0xff]
    %v518 = vld [vmem:[%s484 + $0x108] sm:$0xff]
    %v519 = vld [vmem:[%s484 + $0x110] sm:$0xff]
    %v520 = vld [vmem:[%s484 + $0x118] sm:$0xff]
    %v521 = vld [vmem:[%s484 + $0x120] sm:$0xff]
    %v522 = vld [vmem:[%s484 + $0x128] sm:$0xff]
    %v523 = vld [vmem:[%s484 + $0x130] sm:$0xff]
    %v524 = vld [vmem:[%s484 + $0x138] sm:$0xff]
    %v525 = vld [vmem:[%s484 + $0x140] sm:$0xff]
    %v526 = vld [vmem:[%s484 + $0x148] sm:$0xff]
    %v527 = vld [vmem:[%s484 + $0x150] sm:$0xff]
    %v528 = vld [vmem:[%s484 + $0x158] sm:$0xff]
    %v529 = vld [vmem:[%s484 + $0x160] sm:$0xff]
    %v530 = vld [vmem:[%s484 + $0x168] sm:$0xff]
    %v531 = vld [vmem:[%s484 + $0x170] sm:$0xff]
    %v532 = vld [vmem:[%s484 + $0x178] sm:$0xff]
    %v533 = vld [vmem:[%s484 + $0x180] sm:$0xff]
    %v534 = vld [vmem:[%s484 + $0x188] sm:$0xff]
    %v535 = vld [vmem:[%s484 + $0x190] sm:$0xff]
    %v536 = vld [vmem:[%s484 + $0x198] sm:$0xff]
    %v537 = vld [vmem:[%s484 + $0x1a0] sm:$0xff]
    %v538 = vld [vmem:[%s484 + $0x1a8] sm:$0xff]
    %v539 = vld [vmem:[%s484 + $0x1b0] sm:$0xff]
    %v540 = vld [vmem:[%s484 + $0x1b8] sm:$0xff]
    %v541 = vld [vmem:[%s484 + $0x1c0] sm:$0xff]
    %v542 = vld [vmem:[%s484 + $0x1c8] sm:$0xff]
    %v543 = vld [vmem:[%s484 + $0x1d0] sm:$0xff]
    %v544 = vld [vmem:[%s484 + $0x1d8] sm:$0xff]
    %v545 = vld [vmem:[%s484 + $0x1e0] sm:$0xff]
    %v546 = vld [vmem:[%s484 + $0x1e8] sm:$0xff]
    %v547 = vld [vmem:[%s484 + $0x1f0] sm:$0xff]
    %v548 = vld [vmem:[%s484 + $0x1f8] sm:$0xff]
    %s549 = scalar_lea.vmem %s4, 4
    %v550 = vld [vmem:[%s549] sm:$0xf]
    %v552 = vlaneseq
    %v553 = vshrl.u32 %v552, 7
    %v554 = vsub.s32 0, %v553
    %v555 = vrot.slane %v550, %v554
    %v556 = vlaneseq
    %v557 = vshrl.u32 %v556, 7
    %v558 = vsub.s32 2, %v557
    %v559 = vrot.slane %v550, %v558
    %v560 = vlaneseq
    %v561 = vshrl.u32 %v560, 7
    %v562 = vsub.s32 3, %v561
    %v563 = vrot.slane %v550, %v562
    %567 = vmatprep.subr.mxu0 %v486
    %568 = vmatpush1.msra.mxu0 %v485
    %569 = vmatprep.subr.mxu0 %v490
    %570 = vmatpush1.msra.mxu0 %v489
    %571 = vmatprep.subr.mxu0 %v494
    %572 = vmatpush1.msra.mxu0 %v493
    %573 = vmatprep.subr.mxu0 %v498
    %574 = vmatpush1.msra.mxu0 %v497
    %575 = vmatprep.subr.mxu0 %v502
    %576 = vmatpush1.msra.mxu0 %v501
    %577 = vmatprep.subr.mxu0 %v506
    %578 = vmatpush1.msra.mxu0 %v505
    %579 = vmatprep.subr.mxu0 %v510
    %580 = vmatpush1.msra.mxu0 %v509
    %581 = vmatprep.subr.mxu0 %v514
    %582 = vmatpush1.msra.mxu0 %v513
    %583 = vmatprep.subr.mxu0 %v518
    %584 = vmatpush1.msra.mxu0 %v517
    %585 = vmatprep.subr.mxu0 %v522
    %586 = vmatpush1.msra.mxu0 %v521
    %587 = vmatprep.subr.mxu0 %v526
    %588 = vmatpush1.msra.mxu0 %v525
    %589 = vmatprep.subr.mxu0 %v530
    %590 = vmatpush1.msra.mxu0 %v529
    %591 = vmatprep.subr.mxu0 %v534
    %592 = vmatpush1.msra.mxu0 %v533
    %593 = vmatprep.subr.mxu0 %v538
    %594 = vmatpush1.msra.mxu0 %v537
    %595 = vmatprep.subr.mxu0 %v542
    %596 = vmatpush1.msra.mxu0 %v541
    %597 = vmatprep.subr.mxu0 %v546
    %598 = vmatpush1.msra.mxu0 %v545
    %599 = vmatprep.subr.mxu0 0.0
    %600 = vmatpush1.msra.mxu0 0.0
    %601 = vmatprep.subr.mxu0 0.0
    %602 = vmatpush1.msra.mxu0 0.0
    %603 = vmatprep.subr.mxu0 0.0
    %604 = vmatpush1.msra.mxu0 0.0
    %605 = vmatprep.subr.mxu0 0.0
    %606 = vmatpush1.msra.mxu0 0.0
    %607 = vmatprep.subr.mxu0 0.0
    %608 = vmatpush1.msra.mxu0 0.0
    %609 = vmatprep.subr.mxu0 0.0
    %610 = vmatpush1.msra.mxu0 0.0
    %611 = vmatprep.subr.mxu0 0.0
    %612 = vmatpush1.msra.mxu0 0.0
    %613 = vmatprep.subr.mxu0 0.0
    %614 = vmatpush1.msra.mxu0 0.0
    %615 = vmatprep.subr.mxu0 0.0
    %616 = vmatpush1.msra.mxu0 0.0
    %617 = vmatprep.subr.mxu0 0.0
    %618 = vmatpush1.msra.mxu0 0.0
    %619 = vmatprep.subr.mxu0 0.0
    %620 = vmatpush1.msra.mxu0 0.0
    %621 = vmatprep.subr.mxu0 0.0
    %622 = vmatpush1.msra.mxu0 0.0
    %623 = vmatprep.subr.mxu0 0.0
    %624 = vmatpush1.msra.mxu0 0.0
    %625 = vmatprep.subr.mxu0 0.0
    %626 = vmatpush1.msra.mxu0 0.0
    %627 = vmatprep.subr.mxu0 0.0
    %628 = vmatpush1.msra.mxu0 0.0
    %629 = vmatprep.subr.mxu0 0.0
    %630 = vmatpush1.msra.mxu0 0.0
    %631 = vmatprep.mubr.f32.mxu0 0.0
    %632 = vmatmul.mubr.f32.gmra.mrb[0].mxu0 %v483
    %v633 = vpop.f32.mrb[0].mxu0
    %v634 = vadd.f32 %v555, %v633
    %v635 = vpop.f32.mrb[0].mxu0
    %636 = vdwg.mxu0
    %637 = vmatprep.subr.mxu0 %v488
    %638 = vmatpush1.msra.mxu0 %v487
    %639 = vmatprep.subr.mxu0 %v492
    %640 = vmatpush1.msra.mxu0 %v491
    %641 = vmatprep.subr.mxu0 %v496
    %642 = vmatpush1.msra.mxu0 %v495
    %643 = vmatprep.subr.mxu0 %v500
    %644 = vmatpush1.msra.mxu0 %v499
    %645 = vmatprep.subr.mxu0 %v504
    %646 = vmatpush1.msra.mxu0 %v503
    %647 = vmatprep.subr.mxu0 %v508
    %648 = vmatpush1.msra.mxu0 %v507
    %649 = vmatprep.subr.mxu0 %v512
    %650 = vmatpush1.msra.mxu0 %v511
    %651 = vmatprep.subr.mxu0 %v516
    %652 = vmatpush1.msra.mxu0 %v515
    %653 = vmatprep.subr.mxu0 %v520
    %654 = vmatpush1.msra.mxu0 %v519
    %655 = vmatprep.subr.mxu0 %v524
    %656 = vmatpush1.msra.mxu0 %v523
    %657 = vmatprep.subr.mxu0 %v528
    %658 = vmatpush1.msra.mxu0 %v527
    %659 = vmatprep.subr.mxu0 %v532
    %660 = vmatpush1.msra.mxu0 %v531
    %661 = vmatprep.subr.mxu0 %v536
    %662 = vmatpush1.msra.mxu0 %v535
    %663 = vmatprep.subr.mxu0 %v540
    %664 = vmatpush1.msra.mxu0 %v539
    %665 = vmatprep.subr.mxu0 %v544
    %666 = vmatpush1.msra.mxu0 %v543
    %667 = vmatprep.subr.mxu0 %v548
    %668 = vmatpush1.msra.mxu0 %v547
    %669 = vmatprep.subr.mxu0 0.0
    %670 = vmatpush1.msra.mxu0 0.0
    %671 = vmatprep.subr.mxu0 0.0
    %672 = vmatpush1.msra.mxu0 0.0
    %673 = vmatprep.subr.mxu0 0.0
    %674 = vmatpush1.msra.mxu0 0.0
    %675 = vmatprep.subr.mxu0 0.0
    %676 = vmatpush1.msra.mxu0 0.0
    %677 = vmatprep.subr.mxu0 0.0
    %678 = vmatpush1.msra.mxu0 0.0
    %679 = vmatprep.subr.mxu0 0.0
    %680 = vmatpush1.msra.mxu0 0.0
    %681 = vmatprep.subr.mxu0 0.0
    %682 = vmatpush1.msra.mxu0 0.0
    %683 = vmatprep.subr.mxu0 0.0
    %684 = vmatpush1.msra.mxu0 0.0
    %685 = vmatprep.subr.mxu0 0.0
    %686 = vmatpush1.msra.mxu0 0.0
    %687 = vmatprep.subr.mxu0 0.0
    %688 = vmatpush1.msra.mxu0 0.0
    %689 = vmatprep.subr.mxu0 0.0
    %690 = vmatpush1.msra.mxu0 0.0
    %691 = vmatprep.subr.mxu0 0.0
    %692 = vmatpush1.msra.mxu0 0.0
    %693 = vmatprep.subr.mxu0 0.0
    %694 = vmatpush1.msra.mxu0 0.0
    %695 = vmatprep.subr.mxu0 0.0
    %696 = vmatpush1.msra.mxu0 0.0
    %697 = vmatprep.subr.mxu0 0.0
    %698 = vmatpush1.msra.mxu0 0.0
    %699 = vmatprep.subr.mxu0 0.0
    %700 = vmatpush1.msra.mxu0 0.0
    %701 = vmatprep.mubr.f32.mxu0 0.0
    %702 = vmatmul.mubr.f32.gmra.mrb[0].mxu0 %v483
    %v703 = vpop.f32.mrb[0].mxu0
    %v704 = vadd.f32 %v559, %v703
    %v705 = vpop.f32.mrb[0].mxu0
    %v706 = vadd.f32 %v563, %v705
    %707 = vdwg.mxu0
    %v708 = vmul.f32 %v634, 0.5
    %v709 = vtanh.pop %v708
    %v710 = vadd.f32 %v709, 1.0
    %v711 = vmul.f32 %v710, 0.5
    %v712 = vtanh.pop %v704
    %v713 = vmul.f32 %v706, 0.5
    %v714 = vtanh.pop %v713
    %v715 = vadd.f32 %v714, 1.0
    %v716 = vmul.f32 %v715, 0.5
    %v717 = vmul.f32 %v711, %v712
    %v718 = vtanh.pop %v717
    %v719 = vmul.f32 %v716, %v718
    %s720 = scalar_lea.vmem [#allocation4], 1024
    %v721 = vld [vmem:[%s720] sm:$0xff]
    %v722 = vld [vmem:[%s720 + $0x8] sm:$0xff]
    %v723 = vld [vmem:[%s720 + $0x10] sm:$0xff]
    %v724 = vld [vmem:[%s720 + $0x18] sm:$0xff]
    %v725 = vld [vmem:[%s720 + $0x20] sm:$0xff]
    %v726 = vld [vmem:[%s720 + $0x28] sm:$0xff]
    %v727 = vld [vmem:[%s720 + $0x30] sm:$0xff]
    %v728 = vld [vmem:[%s720 + $0x38] sm:$0xff]
    %v729 = vld [vmem:[%s720 + $0x40] sm:$0xff]
    %v730 = vld [vmem:[%s720 + $0x48] sm:$0xff]
    %v731 = vld [vmem:[%s720 + $0x50] sm:$0xff]
    %v732 = vld [vmem:[%s720 + $0x58] sm:$0xff]
    %v733 = vld [vmem:[%s720 + $0x60] sm:$0xff]
    %v734 = vld [vmem:[%s720 + $0x68] sm:$0xff]
    %v735 = vld [vmem:[%s720 + $0x70] sm:$0xff]
    %v736 = vld [vmem:[%s720 + $0x78] sm:$0xff]
    %v737 = vld [vmem:[%s720 + $0x80] sm:$0xff]
    %v738 = vld [vmem:[%s720 + $0x88] sm:$0xff]
    %v739 = vld [vmem:[%s720 + $0x90] sm:$0xff]
    %v740 = vld [vmem:[%s720 + $0x98] sm:$0xff]
    %v741 = vld [vmem:[%s720 + $0xa0] sm:$0xff]
    %v742 = vld [vmem:[%s720 + $0xa8] sm:$0xff]
    %v743 = vld [vmem:[%s720 + $0xb0] sm:$0xff]
    %v744 = vld [vmem:[%s720 + $0xb8] sm:$0xff]
    %v745 = vld [vmem:[%s720 + $0xc0] sm:$0xff]
    %v746 = vld [vmem:[%s720 + $0xc8] sm:$0xff]
    %v747 = vld [vmem:[%s720 + $0xd0] sm:$0xff]
    %v748 = vld [vmem:[%s720 + $0xd8] sm:$0xff]
    %v749 = vld [vmem:[%s720 + $0xe0] sm:$0xff]
    %v750 = vld [vmem:[%s720 + $0xe8] sm:$0xff]
    %v751 = vld [vmem:[%s720 + $0xf0] sm:$0xff]
    %v752 = vld [vmem:[%s720 + $0xf8] sm:$0xff]
    %v753 = vld [vmem:[%s720 + $0x100] sm:$0xff]
    %v754 = vld [vmem:[%s720 + $0x108] sm:$0xff]
    %v755 = vld [vmem:[%s720 + $0x110] sm:$0xff]
    %v756 = vld [vmem:[%s720 + $0x118] sm:$0xff]
    %v757 = vld [vmem:[%s720 + $0x120] sm:$0xff]
    %v758 = vld [vmem:[%s720 + $0x128] sm:$0xff]
    %v759 = vld [vmem:[%s720 + $0x130] sm:$0xff]
    %v760 = vld [vmem:[%s720 + $0x138] sm:$0xff]
    %v761 = vld [vmem:[%s720 + $0x140] sm:$0xff]
    %v762 = vld [vmem:[%s720 + $0x148] sm:$0xff]
    %v763 = vld [vmem:[%s720 + $0x150] sm:$0xff]
    %v764 = vld [vmem:[%s720 + $0x158] sm:$0xff]
    %v765 = vld [vmem:[%s720 + $0x160] sm:$0xff]
    %v766 = vld [vmem:[%s720 + $0x168] sm:$0xff]
    %v767 = vld [vmem:[%s720 + $0x170] sm:$0xff]
    %v768 = vld [vmem:[%s720 + $0x178] sm:$0xff]
    %v769 = vld [vmem:[%s720 + $0x180] sm:$0xff]
    %v770 = vld [vmem:[%s720 + $0x188] sm:$0xff]
    %v771 = vld [vmem:[%s720 + $0x190] sm:$0xff]
    %v772 = vld [vmem:[%s720 + $0x198] sm:$0xff]
    %v773 = vld [vmem:[%s720 + $0x1a0] sm:$0xff]
    %v774 = vld [vmem:[%s720 + $0x1a8] sm:$0xff]
    %v775 = vld [vmem:[%s720 + $0x1b0] sm:$0xff]
    %v776 = vld [vmem:[%s720 + $0x1b8] sm:$0xff]
    %v777 = vld [vmem:[%s720 + $0x1c0] sm:$0xff]
    %v778 = vld [vmem:[%s720 + $0x1c8] sm:$0xff]
    %v779 = vld [vmem:[%s720 + $0x1d0] sm:$0xff]
    %v780 = vld [vmem:[%s720 + $0x1d8] sm:$0xff]
    %v781 = vld [vmem:[%s720 + $0x1e0] sm:$0xff]
    %v782 = vld [vmem:[%s720 + $0x1e8] sm:$0xff]
    %v783 = vld [vmem:[%s720 + $0x1f0] sm:$0xff]
    %v784 = vld [vmem:[%s720 + $0x1f8] sm:$0xff]
    %s785 = scalar_lea.vmem %s4, 8
    %v786 = vld [vmem:[%s785] sm:$0xf]
    %v788 = vlaneseq
    %v789 = vshrl.u32 %v788, 7
    %v790 = vsub.s32 0, %v789
    %v791 = vrot.slane %v786, %v790
    %v792 = vlaneseq
    %v793 = vshrl.u32 %v792, 7
    %v794 = vsub.s32 2, %v793
    %v795 = vrot.slane %v786, %v794
    %v796 = vlaneseq
    %v797 = vshrl.u32 %v796, 7
    %v798 = vsub.s32 3, %v797
    %v799 = vrot.slane %v786, %v798
    %803 = vmatprep.subr.mxu0 %v722
    %804 = vmatpush1.msra.mxu0 %v721
    %805 = vmatprep.subr.mxu0 %v726
    %806 = vmatpush1.msra.mxu0 %v725
    %807 = vmatprep.subr.mxu0 %v730
    %808 = vmatpush1.msra.mxu0 %v729
    %809 = vmatprep.subr.mxu0 %v734
    %810 = vmatpush1.msra.mxu0 %v733
    %811 = vmatprep.subr.mxu0 %v738
    %812 = vmatpush1.msra.mxu0 %v737
    %813 = vmatprep.subr.mxu0 %v742
    %814 = vmatpush1.msra.mxu0 %v741
    %815 = vmatprep.subr.mxu0 %v746
    %816 = vmatpush1.msra.mxu0 %v745
    %817 = vmatprep.subr.mxu0 %v750
    %818 = vmatpush1.msra.mxu0 %v749
    %819 = vmatprep.subr.mxu0 %v754
    %820 = vmatpush1.msra.mxu0 %v753
    %821 = vmatprep.subr.mxu0 %v758
    %822 = vmatpush1.msra.mxu0 %v757
    %823 = vmatprep.subr.mxu0 %v762
    %824 = vmatpush1.msra.mxu0 %v761
    %825 = vmatprep.subr.mxu0 %v766
    %826 = vmatpush1.msra.mxu0 %v765
    %827 = vmatprep.subr.mxu0 %v770
    %828 = vmatpush1.msra.mxu0 %v769
    %829 = vmatprep.subr.mxu0 %v774
    %830 = vmatpush1.msra.mxu0 %v773
    %831 = vmatprep.subr.mxu0 %v778
    %832 = vmatpush1.msra.mxu0 %v777
    %833 = vmatprep.subr.mxu0 %v782
    %834 = vmatpush1.msra.mxu0 %v781
    %835 = vmatprep.subr.mxu0 0.0
    %836 = vmatpush1.msra.mxu0 0.0
    %837 = vmatprep.subr.mxu0 0.0
    %838 = vmatpush1.msra.mxu0 0.0
    %839 = vmatprep.subr.mxu0 0.0
    %840 = vmatpush1.msra.mxu0 0.0
    %841 = vmatprep.subr.mxu0 0.0
    %842 = vmatpush1.msra.mxu0 0.0
    %843 = vmatprep.subr.mxu0 0.0
    %844 = vmatpush1.msra.mxu0 0.0
    %845 = vmatprep.subr.mxu0 0.0
    %846 = vmatpush1.msra.mxu0 0.0
    %847 = vmatprep.subr.mxu0 0.0
    %848 = vmatpush1.msra.mxu0 0.0
    %849 = vmatprep.subr.mxu0 0.0
    %850 = vmatpush1.msra.mxu0 0.0
    %851 = vmatprep.subr.mxu0 0.0
    %852 = vmatpush1.msra.mxu0 0.0
    %853 = vmatprep.subr.mxu0 0.0
    %854 = vmatpush1.msra.mxu0 0.0
    %855 = vmatprep.subr.mxu0 0.0
    %856 = vmatpush1.msra.mxu0 0.0
    %857 = vmatprep.subr.mxu0 0.0
    %858 = vmatpush1.msra.mxu0 0.0
    %859 = vmatprep.subr.mxu0 0.0
    %860 = vmatpush1.msra.mxu0 0.0
    %861 = vmatprep.subr.mxu0 0.0
    %862 = vmatpush1.msra.mxu0 0.0
    %863 = vmatprep.subr.mxu0 0.0
    %864 = vmatpush1.msra.mxu0 0.0
    %865 = vmatprep.subr.mxu0 0.0
    %866 = vmatpush1.msra.mxu0 0.0
    %867 = vmatprep.mubr.f32.mxu0 0.0
    %868 = vmatmul.mubr.f32.gmra.mrb[0].mxu0 %v719
    %v869 = vpop.f32.mrb[0].mxu0
    %v870 = vadd.f32 %v791, %v869
    %v871 = vpop.f32.mrb[0].mxu0
    %872 = vdwg.mxu0
    %873 = vmatprep.subr.mxu0 %v724
    %874 = vmatpush1.msra.mxu0 %v723
    %875 = vmatprep.subr.mxu0 %v728
    %876 = vmatpush1.msra.mxu0 %v727
    %877 = vmatprep.subr.mxu0 %v732
    %878 = vmatpush1.msra.mxu0 %v731
    %879 = vmatprep.subr.mxu0 %v736
    %880 = vmatpush1.msra.mxu0 %v735
    %881 = vmatprep.subr.mxu0 %v740
    %882 = vmatpush1.msra.mxu0 %v739
    %883 = vmatprep.subr.mxu0 %v744
    %884 = vmatpush1.msra.mxu0 %v743
    %885 = vmatprep.subr.mxu0 %v748
    %886 = vmatpush1.msra.mxu0 %v747
    %887 = vmatprep.subr.mxu0 %v752
    %888 = vmatpush1.msra.mxu0 %v751
    %889 = vmatprep.subr.mxu0 %v756
    %890 = vmatpush1.msra.mxu0 %v755
    %891 = vmatprep.subr.mxu0 %v760
    %892 = vmatpush1.msra.mxu0 %v759
    %893 = vmatprep.subr.mxu0 %v764
    %894 = vmatpush1.msra.mxu0 %v763
    %895 = vmatprep.subr.mxu0 %v768
    %896 = vmatpush1.msra.mxu0 %v767
    %897 = vmatprep.subr.mxu0 %v772
    %898 = vmatpush1.msra.mxu0 %v771
    %899 = vmatprep.subr.mxu0 %v776
    %900 = vmatpush1.msra.mxu0 %v775
    %901 = vmatprep.subr.mxu0 %v780
    %902 = vmatpush1.msra.mxu0 %v779
    %903 = vmatprep.subr.mxu0 %v784
    %904 = vmatpush1.msra.mxu0 %v783
    %905 = vmatprep.subr.mxu0 0.0
    %906 = vmatpush1.msra.mxu0 0.0
    %907 = vmatprep.subr.mxu0 0.0
    %908 = vmatpush1.msra.mxu0 0.0
    %909 = vmatprep.subr.mxu0 0.0
    %910 = vmatpush1.msra.mxu0 0.0
    %911 = vmatprep.subr.mxu0 0.0
    %912 = vmatpush1.msra.mxu0 0.0
    %913 = vmatprep.subr.mxu0 0.0
    %914 = vmatpush1.msra.mxu0 0.0
    %915 = vmatprep.subr.mxu0 0.0
    %916 = vmatpush1.msra.mxu0 0.0
    %917 = vmatprep.subr.mxu0 0.0
    %918 = vmatpush1.msra.mxu0 0.0
    %919 = vmatprep.subr.mxu0 0.0
    %920 = vmatpush1.msra.mxu0 0.0
    %921 = vmatprep.subr.mxu0 0.0
    %922 = vmatpush1.msra.mxu0 0.0
    %923 = vmatprep.subr.mxu0 0.0
    %924 = vmatpush1.msra.mxu0 0.0
    %925 = vmatprep.subr.mxu0 0.0
    %926 = vmatpush1.msra.mxu0 0.0
    %927 = vmatprep.subr.mxu0 0.0
    %928 = vmatpush1.msra.mxu0 0.0
    %929 = vmatprep.subr.mxu0 0.0
    %930 = vmatpush1.msra.mxu0 0.0
    %931 = vmatprep.subr.mxu0 0.0
    %932 = vmatpush1.msra.mxu0 0.0
    %933 = vmatprep.subr.mxu0 0.0
    %934 = vmatpush1.msra.mxu0 0.0
    %935 = vmatprep.subr.mxu0 0.0
    %936 = vmatpush1.msra.mxu0 0.0
    %937 = vmatprep.mubr.f32.mxu0 0.0
    %938 = vmatmul.mubr.f32.gmra.mrb[0].mxu0 %v719
    %v939 = vpop.f32.mrb[0].mxu0
    %v940 = vadd.f32 %v795, %v939
    %v941 = vpop.f32.mrb[0].mxu0
    %v942 = vadd.f32 %v799, %v941
    %943 = vdwg.mxu0
    %v944 = vmul.f32 %v870, 0.5
    %v945 = vtanh.pop %v944
    %v946 = vadd.f32 %v945, 1.0
    %v947 = vmul.f32 %v946, 0.5
    %v948 = vtanh.pop %v940
    %v949 = vmul.f32 %v942, 0.5
    %v950 = vtanh.pop %v949
    %v951 = vadd.f32 %v950, 1.0
    %v952 = vmul.f32 %v951, 0.5
    %v953 = vmul.f32 %v947, %v948
    %v954 = vtanh.pop %v953
    %v955 = vmul.f32 %v952, %v954
    %v956 = vld [vmem:[#allocation6] sm:$0xff]
    %v957 = vld [vmem:[#allocation6 + $0x8] sm:$0xff]
    %v958 = vld [vmem:[#allocation6 + $0x10] sm:$0xff]
    %v959 = vld [vmem:[#allocation6 + $0x18] sm:$0xff]
    %v960 = vld [vmem:[#allocation6 + $0x20] sm:$0xff]
    %v961 = vld [vmem:[#allocation6 + $0x28] sm:$0xff]
    %v962 = vld [vmem:[#allocation6 + $0x30] sm:$0xff]
    %v963 = vld [vmem:[#allocation6 + $0x38] sm:$0xff]
    %v964 = vld [vmem:[#allocation6 + $0x40] sm:$0xff]
    %v965 = vld [vmem:[#allocation6 + $0x48] sm:$0xff]
    %v966 = vld [vmem:[#allocation6 + $0x50] sm:$0xff]
    %v967 = vld [vmem:[#allocation6 + $0x58] sm:$0xff]
    %v968 = vld [vmem:[#allocation6 + $0x60] sm:$0xff]
    %v969 = vld [vmem:[#allocation6 + $0x68] sm:$0xff]
    %v970 = vld [vmem:[#allocation6 + $0x70] sm:$0xff]
    %v971 = vld [vmem:[#allocation6 + $0x78] sm:$0xff]
    %v972 = vld [vmem:[%s6] sm:$0x1]
    %v974 = vlaneseq
    %v975 = vshrl.u32 %v974, 7
    %v976 = vsub.s32 0, %v975
    %v977 = vrot.slane %v972, %v976
    %979 = vmatprep.subr.mxu0 0.0
    %980 = vmatpush1.msra.mxu0 %v956
    %981 = vmatprep.subr.mxu0 0.0
    %982 = vmatpush1.msra.mxu0 %v957
    %983 = vmatprep.subr.mxu0 0.0
    %984 = vmatpush1.msra.mxu0 %v958
    %985 = vmatprep.subr.mxu0 0.0
    %986 = vmatpush1.msra.mxu0 %v959
    %987 = vmatprep.subr.mxu0 0.0
    %988 = vmatpush1.msra.mxu0 %v960
    %989 = vmatprep.subr.mxu0 0.0
    %990 = vmatpush1.msra.mxu0 %v961
    %991 = vmatprep.subr.mxu0 0.0
    %992 = vmatpush1.msra.mxu0 %v962
    %993 = vmatprep.subr.mxu0 0.0
    %994 = vmatpush1.msra.mxu0 %v963
    %995 = vmatprep.subr.mxu0 0.0
    %996 = vmatpush1.msra.mxu0 %v964
    %997 = vmatprep.subr.mxu0 0.0
    %998 = vmatpush1.msra.mxu0 %v965
    %999 = vmatprep.subr.mxu0 0.0
    %1000 = vmatpush1.msra.mxu0 %v966
    %1001 = vmatprep.subr.mxu0 0.0
    %1002 = vmatpush1.msra.mxu0 %v967
    %1003 = vmatprep.subr.mxu0 0.0
    %1004 = vmatpush1.msra.mxu0 %v968
    %1005 = vmatprep.subr.mxu0 0.0
    %1006 = vmatpush1.msra.mxu0 %v969
    %1007 = vmatprep.subr.mxu0 0.0
    %1008 = vmatpush1.msra.mxu0 %v970
    %1009 = vmatprep.subr.mxu0 0.0
    %1010 = vmatpush1.msra.mxu0 %v971
    %1011 = vmatprep.subr.mxu0 0.0
    %1012 = vmatpush1.msra.mxu0 0.0
    %1013 = vmatprep.subr.mxu0 0.0
    %1014 = vmatpush1.msra.mxu0 0.0
    %1015 = vmatprep.subr.mxu0 0.0
    %1016 = vmatpush1.msra.mxu0 0.0
    %1017 = vmatprep.subr.mxu0 0.0
    %1018 = vmatpush1.msra.mxu0 0.0
    %1019 = vmatprep.subr.mxu0 0.0
    %1020 = vmatpush1.msra.mxu0 0.0
    %1021 = vmatprep.subr.mxu0 0.0
    %1022 = vmatpush1.msra.mxu0 0.0
    %1023 = vmatprep.subr.mxu0 0.0
    %1024 = vmatpush1.msra.mxu0 0.0
    %1025 = vmatprep.subr.mxu0 0.0
    %1026 = vmatpush1.msra.mxu0 0.0
    %1027 = vmatprep.subr.mxu0 0.0
    %1028 = vmatpush1.msra.mxu0 0.0
    %1029 = vmatprep.subr.mxu0 0.0
    %1030 = vmatpush1.msra.mxu0 0.0
    %1031 = vmatprep.subr.mxu0 0.0
    %1032 = vmatpush1.msra.mxu0 0.0
    %1033 = vmatprep.subr.mxu0 0.0
    %1034 = vmatpush1.msra.mxu0 0.0
    %1035 = vmatprep.subr.mxu0 0.0
    %1036 = vmatpush1.msra.mxu0 0.0
    %1037 = vmatprep.subr.mxu0 0.0
    %1038 = vmatpush1.msra.mxu0 0.0
    %1039 = vmatprep.subr.mxu0 0.0
    %1040 = vmatpush1.msra.mxu0 0.0
    %1041 = vmatprep.subr.mxu0 0.0
    %1042 = vmatpush1.msra.mxu0 0.0
    %1043 = vmatprep.mubr.f32.mxu0 0.0
    %1044 = vmatmul.mubr.f32.gmra.mrb[0].mxu0 %v955
    %v1045 = vpop.f32.mrb[0].mxu0
    %v1046 = vadd.f32 %v977, %v1045
    %v1047 = vpop.f32.mrb[0].mxu0
    %1048 = vdwg.mxu0
    %1049 = vmax.xlane.f32.xlu0 %v1046
    %v1050 = vpop.xlane.xlu0 %1049
    %v1051 = vsub.f32 %v1046, %v1050
    %v1052 = vmul.f32 %v1051, 1.442695
    %v1053 = vpow.pop %v1052
    %1054 = vadd.xlane.f32.xlu0 %v1053
    %v1055 = vpop.xlane.xlu0 %1054
    %v1056 = vrcp.pop %v1055
    %v1057 = vmul.f32 %v1053, %v1056
    %1058 = vst [vmem:[%s7] sm:$0xff] %v1057
    // Predicated region
    $region42: #{lstm_model_forward.1} parent=1 // pred_check
      _
    $region43: #{lstm_model_forward.1} parent=1 // pred_check_branch
      %1060 = sbr.rel (0) target = $region45
    $region44: #{lstm_model_forward.1} parent=1 // pred_region
      _
    $region45: #{lstm_model_forward.1} parent=1 // pred_fallthru
      _
    // Predicated region
    $region46: #{lstm_model_forward.1} parent=1 // pred_check
      _
    $region47: #{lstm_model_forward.1} parent=1 // pred_check_branch
      %1062 = sbr.rel (0) target = $region49
    $region48: #{lstm_model_forward.1} parent=1 // pred_region
      _
    $region49: #{lstm_model_forward.1} parent=1 // pred_fallthru
      _
    %1063 = vsyncpa [#allocation3], 1
    %1064 = vsyncpa [#allocation5], 1

</llo_original>
